<compile_context>
chip_gen: v6e
topology: v6e:2x2x1
jax: 0.10.0
libtpu: 0.0.40
codegen_flags: <defaults>
</compile_context>

<pallas_src>
import functools

import jax
import jax.numpy as jnp
import numpy as np
from jax.experimental import pallas as pl
from jax.experimental.pallas import tpu as pltpu


# ---------------------------------------------------------------------------
# Stage A: per-batch block mask + global scale.
# ---------------------------------------------------------------------------
def _mask_kernel(pm_ref, mask_ref, scale_ref, acc_ref, *, block_size, H, W, numel):
    b = pl.program_id(0)

    @pl.when(b == 0)
    def _init():
        acc_ref[...] = jnp.zeros_like(acc_ref)

    pm = pm_ref[...]                      # (1, Hp, Wp) zero-padded seed mask
    # Separable stride-1 max-pool: rows (sublane shifts) then columns.
    # Zero padding == max_pool2d's -inf padding here: the seed mask is >= 0 and
    # every window contains at least one in-bounds element.
    row = pm[:, 0:H, :]
    for dy in range(1, block_size):
        row = jnp.maximum(row, pm[:, dy:dy + H, :])
    pooled = row[:, :, 0:W]
    for dx in range(1, block_size):
        pooled = jnp.maximum(pooled, row[:, :, dx:dx + W])

    block_mask = 1.0 - pooled             # (1, H, W), values in {0, 1}
    mask_ref[...] = block_mask.astype(mask_ref.dtype)
    acc_ref[...] = acc_ref[...] + jnp.sum(block_mask)

    @pl.when(b == pl.num_programs(0) - 1)
    def _finalize():
        # Guard the degenerate all-dropped case (torch would emit inf/nan).
        scale_ref[...] = jnp.float32(numel) / jnp.maximum(acc_ref[...],
                                                          jnp.float32(1.0))


def _block_mask_and_scale(pm, block_size, H, W, mask_dtype):
    B, Hp, Wp = pm.shape
    kernel = functools.partial(_mask_kernel, block_size=block_size, H=H, W=W,
                               numel=float(B * H * W))
    return pl.pallas_call(
        kernel,
        out_shape=(jax.ShapeDtypeStruct((B, H, W), mask_dtype),
                   jax.ShapeDtypeStruct((1, 1), jnp.float32)),
        grid_spec=pltpu.PrefetchScalarGridSpec(
            num_scalar_prefetch=0,
            grid=(B,),
            in_specs=[pl.BlockSpec((1, Hp, Wp), lambda b: (b, 0, 0))],
            out_specs=[pl.BlockSpec((1, H, W), lambda b: (b, 0, 0)),
                       pl.BlockSpec((1, 1), lambda b: (0, 0))],
            scratch_shapes=[pltpu.VMEM((1, 1), jnp.float32)],
        ),
        compiler_params=pltpu.CompilerParams(
            # The keep-count accumulates across the batch axis -> sequential.
            dimension_semantics=("arbitrary",)),
    )(pm)


# ---------------------------------------------------------------------------
# Stage B: lane-dense, tiled elementwise apply (the HBM-bound hot path).
# ---------------------------------------------------------------------------
def _apply_kernel(x_ref, m_ref, s_ref, o_ref):
    # x_ref: (1, c_tile, hw_tile); m_ref: (1, 1, hw_tile); s_ref: (1,1) in SMEM.
    scale = s_ref[0, 0]                   # global scale, scalar from SMEM
    o_ref[...] = (x_ref[...] * m_ref[...] * scale).astype(o_ref.dtype)


def _vmem_capacity_bytes():
    try:
        cap = getattr(pltpu.get_tpu_info(), "vmem_capacity_bytes", None)
        if cap:
            return int(cap)
    except Exception:
        pass
    return 64 * 1024 * 1024               # conservative: v7x physical VMEM


def _legal_c_tiles(C, sub):
    """Channel tile sizes that divide C and satisfy the (8,128) block rule:
    multiples of the dtype's sublane packing, plus the full dim. Descending."""
    tiles = [d for d in range(sub, C + 1, sub) if C % d == 0]
    if C not in tiles:
        tiles.append(C)                   # the full dim is always legal
    return sorted(tiles, reverse=True)


def _choose_tiles(B, C, HW, itemsize, sub, tile_budget):
    """Return (c_tile, hw_tile); hw_tile == HW means fully contiguous rows."""
    c_tiles = _legal_c_tiles(C, sub)
    row_bytes = HW * itemsize

    # Preferred: fully contiguous (1, c_tile, HW) blocks, one DMA range each.
    for c in c_tiles:
        if c * row_bytes <= tile_budget:
            c_tile = c
            # v7x megacore: try to keep >= 2 parallel grid steps.
            if B == 1 and C // c_tile == 1:
                for c2 in c_tiles:
                    if c2 < C and c2 * row_bytes <= tile_budget:
                        c_tile = c2
                        break
            return c_tile, HW

    # Rows exceed the budget: tile HW on 128-lane boundaries when possible.
    if HW % 128 == 0:
        hw_tiles = [h for h in range(128, HW + 1, 128) if HW % h == 0]
        c_min = c_tiles[-1]
        hw_tile = 128
        for h in hw_tiles:                # largest hw tile the smallest c fits
            if c_min * h * itemsize <= tile_budget:
                hw_tile = h
        c_tile = c_min
        for c in c_tiles:                 # grow channels back within budget
            if c * hw_tile * itemsize <= tile_budget:
                c_tile = c
                break
        return c_tile, hw_tile

    # HW not lane-divisible: block must span the full HW; take smallest c tile.
    # TODO(synk): element-tiled HW could handle ragged spatial sizes better.
    return c_tiles[-1], HW


def _padded_block_bytes(rows, cols, itemsize, sub):
    """Crude (sublane, lane) tile-padding estimate for one VMEM buffer."""
    r = -(-rows // max(8, sub)) * max(8, sub)
    c = -(-cols // 128) * 128
    return r * c * itemsize


def _apply_dropblock(x, mask, scale, *, donate_input=False, max_tile_bytes=None):
    B, C, H, W = x.shape
    HW = H * W
    x2 = x.reshape(B, C, HW)
    m2 = mask.reshape(B, 1, HW)

    itemsize = x.dtype.itemsize
    sub = {4: 8, 2: 16, 1: 32}.get(itemsize, 8)   # sublane packing per dtype

    vmem_cap = _vmem_capacity_bytes()
    if max_tile_bytes is not None:                # test / tuning override
        tile_budget = int(max_tile_bytes)
    elif vmem_cap <= 64 * 1024 * 1024:            # v7x-class (64 MiB physical)
        tile_budget = 4 * 1024 * 1024
    else:                                         # v5e / v6e (128 MiB physical)
        tile_budget = 12 * 1024 * 1024

    c_tile, hw_tile = _choose_tiles(B, C, HW, itemsize, sub, tile_budget)

    # Explicit VMEM budget: double-buffered x in + out, double-buffered mask
    # block, plus headroom for the SMEM scalar / compiler scratch.
    x_blk = _padded_block_bytes(c_tile, hw_tile, itemsize, sub)
    m_blk = _padded_block_bytes(1, hw_tile, itemsize, sub)
    vmem_limit = 4 * x_blk + 2 * m_blk + (2 << 20)
    vmem_limit = int(min(max(vmem_limit, 8 << 20), int(vmem_cap * 0.9)))

    if hw_tile == HW:
        # Channels innermost so the per-batch mask block stays resident.
        grid = (B, C // c_tile)
        x_spec = pl.BlockSpec((1, c_tile, HW), lambda b, k: (b, k, 0))
        m_spec = pl.BlockSpec((1, 1, HW), lambda b, k: (b, 0, 0))
        o_spec = pl.BlockSpec((1, c_tile, HW), lambda b, k: (b, k, 0))
        sems = ("parallel", "parallel")
    else:
        grid = (B, HW // hw_tile, C // c_tile)
        x_spec = pl.BlockSpec((1, c_tile, hw_tile), lambda b, j, k: (b, k, j))
        m_spec = pl.BlockSpec((1, 1, hw_tile), lambda b, j, k: (b, 0, j))
        o_spec = pl.BlockSpec((1, c_tile, hw_tile), lambda b, j, k: (b, k, j))
        sems = ("parallel", "parallel", "parallel")

    out2 = pl.pallas_call(
        _apply_kernel,
        out_shape=jax.ShapeDtypeStruct((B, C, HW), x.dtype),
        grid_spec=pltpu.PrefetchScalarGridSpec(
            num_scalar_prefetch=0,
            grid=grid,
            in_specs=[x_spec, m_spec,
                      pl.BlockSpec(memory_space=pltpu.MemorySpace.SMEM)],
            out_specs=o_spec,
        ),
        compiler_params=pltpu.CompilerParams(
            dimension_semantics=sems,
            vmem_limit_bytes=vmem_limit),
        input_output_aliases=({0: 0} if donate_input else {}),
    )(x2, m2, scale)
    return out2.reshape(B, C, H, W)


class DropBlock2D:
    """JAX/Pallas equivalent of the PyTorch DropBlock2D module (forward)."""

    def __init__(self, drop_prob, block_size):
        self.drop_prob = float(drop_prob)
        self.block_size = int(block_size)
        self.training = True

    def _compute_gamma(self):
        return self.drop_prob / self.block_size ** 2

    def __call__(self, x, key, *, donate_input=False, max_tile_bytes=None):
        # TODO(synk): torch.rand uses the implicit global host RNG; the caller
        # supplies an explicit jax.random key here.  The Bernoulli draw + pad
        # stay outside the kernel (XLA fuses them) so the kernel is exactly
        # verifiable; fusing pltpu.prng_random_bits in-kernel would save one
        # extra HBM pass for very large feature maps.
        if (not self.training) or self.drop_prob == 0.0:
            return x

        B, C, H, W = x.shape
        bs = self.block_size
        gamma = self._compute_gamma()
        seed_mask = (jax.random.uniform(key, (B, H, W)) < gamma).astype(jnp.float32)

        # Matches F.max_pool2d(padding=bs//2) with the "crop last row/col"
        # convention for even block sizes.
        pad_lo = bs // 2
        pad_hi = bs - 1 - pad_lo
        pm = jnp.pad(seed_mask, ((0, 0), (pad_lo, pad_hi), (pad_lo, pad_hi)))

        mask, scale = _block_mask_and_scale(pm, bs, H, W, x.dtype)
        return _apply_dropblock(x, mask, scale, donate_input=donate_input,
                                max_tile_bytes=max_tile_bytes)


# ---------------------------------------------------------------------------
# Verification
# ---------------------------------------------------------------------------
def _reference(x, seed_mask, block_size):
    """Pure-JAX reference with identical semantics (incl. the div-zero guard)."""
    B, C, H, W = x.shape
    pad_lo = block_size // 2
    pad_hi = block_size - 1 - pad_lo
    pm = jnp.pad(seed_mask, ((0, 0), (pad_lo, pad_hi), (pad_lo, pad_hi)))
    pooled = pm[:, 0:H, 0:W]
    for dy in range(block_size):
        for dx in range(block_size):
            pooled = jnp.maximum(pooled, pm[:, dy:dy + H, dx:dx + W])
    block_mask = 1.0 - pooled
    scale = block_mask.size / jnp.maximum(jnp.sum(block_mask), 1.0)
    return x * block_mask[:, None, :, :] * scale


def _run_case(key, B, C, H, W, drop_prob, block_size, **kwargs):
    k_x, k_mask = jax.random.split(key)
    x = jax.random.normal(k_x, (B, C, H, W), dtype=jnp.float32)

    gamma = drop_prob / block_size ** 2
    seed_mask = (jax.random.uniform(k_mask, (B, H, W)) < gamma).astype(jnp.float32)
    ref = jax.block_until_ready(_reference(x, seed_mask, block_size))

    db = DropBlock2D(drop_prob, block_size)
    out = jax.block_until_ready(db(x, k_mask, **kwargs))
    np.testing.assert_allclose(np.asarray(out), np.asarray(ref), rtol=1e-5, atol=1e-5)


if __name__ == "__main__":
    root = jax.random.PRNGKey(0)
    k1, k2, k3 = jax.random.split(root, 3)

    # Small shape implied by the module spec: full-HW contiguous blocks.
    _run_case(k1, B=2, C=4, H=16, W=16, drop_prob=0.2, block_size=3)
    # Larger case, still full-HW blocks; exercises opt-in input donation.
    _run_case(k2, B=2, C=16, H=64, W=64, drop_prob=0.2, block_size=5,
              donate_input=True)
    # Even block size + artificially tiny tile budget to exercise the
    # 128-lane HW-tiled fallback grid path.
    _run_case(k3, B=2, C=16, H=64, W=64, drop_prob=0.25, block_size=4,
              max_tile_bytes=32 * 1024)

    # Eval mode / drop_prob == 0 are identity passthroughs.
    db_eval = DropBlock2D(0.2, 3)
    db_eval.training = False
    x_eval = jax.random.normal(k1, (2, 4, 16, 16), dtype=jnp.float32)
    np.testing.assert_array_equal(np.asarray(db_eval(x_eval, k1)),
                                  np.asarray(x_eval))

    print("KERNEL_OK")
</pallas_src>

<mosaic_0001>
module attributes {stable_mosaic.version = 11 : i64} {
  func.func @_mask_kernel(%arg0: i32, %arg1: memref<1x18x18xf32, #tpu.memory_space<vmem>>, %arg2: memref<1x16x16xf32, #tpu.memory_space<vmem>>, %arg3: memref<1x1xf32, #tpu.memory_space<vmem>>, %arg4: memref<1x1xf32, #tpu.memory_space<vmem>>) attributes {dimension_semantics = [#tpu.dimension_semantics<arbitrary>], iteration_bounds = array<i64: 2>, scalar_prefetch = 0 : i64, scratch_operands = 1 : i64, tpu.core_type = #tpu.core_type<tc>, window_params = [{transform_indices = @transform_0, window_bounds = array<i64: 1, 18, 18>}, {transform_indices = @transform_1, window_bounds = array<i64: 1, 16, 16>}, {pipeline_mode = #tpu.pipeline_mode<synchronous>, transform_indices = @transform_2, window_bounds = array<i64: 1, 1>}]} {
    %c0_i32 = arith.constant 0 : i32
    %0 = arith.cmpi eq, %arg0, %c0_i32 : i32
    %1 = arith.extui %0 : i1 to i32
    %c0_i32_0 = arith.constant 0 : i32
    %2 = arith.cmpi ne, %1, %c0_i32_0 : i32
    scf.if %2 {
      %cst_12 = arith.constant 0.000000e+00 : f32
      %28 = vector.broadcast %cst_12 : f32 to vector<1x1xf32>
      %c0_13 = arith.constant 0 : index
      %c0_14 = arith.constant 0 : index
      %29 = vector.load %arg4[%c0_13, %c0_14] : memref<1x1xf32, #tpu.memory_space<vmem>>, vector<1x1xf32>
      tpu.vector_store %arg4[%c0_13, %c0_14], %28 {strides = array<i32>} : memref<1x1xf32, #tpu.memory_space<vmem>>, vector<1x1xf32>,
    } else {
    }
    %c0 = arith.constant 0 : index
    %c0_1 = arith.constant 0 : index
    %c0_2 = arith.constant 0 : index
    %3 = vector.load %arg1[%c0, %c0_1, %c0_2] : memref<1x18x18xf32, #tpu.memory_space<vmem>>, vector<1x18x18xf32>
    %4 = vector.extract_strided_slice %3 {offsets = [0, 0, 0], sizes = [1, 16, 18], strides = [1, 1, 1]} : vector<1x18x18xf32> to vector<1x16x18xf32>
    %5 = vector.extract_strided_slice %3 {offsets = [0, 1, 0], sizes = [1, 16, 18], strides = [1, 1, 1]} : vector<1x18x18xf32> to vector<1x16x18xf32>
    %6 = arith.maximumf %4, %5 : vector<1x16x18xf32>
    %7 = vector.extract_strided_slice %3 {offsets = [0, 2, 0], sizes = [1, 16, 18], strides = [1, 1, 1]} : vector<1x18x18xf32> to vector<1x16x18xf32>
    %8 = arith.maximumf %6, %7 : vector<1x16x18xf32>
    %9 = vector.extract_strided_slice %8 {offsets = [0, 0, 0], sizes = [1, 16, 16], strides = [1, 1, 1]} : vector<1x16x18xf32> to vector<1x16x16xf32>
    %10 = vector.extract_strided_slice %8 {offsets = [0, 0, 1], sizes = [1, 16, 16], strides = [1, 1, 1]} : vector<1x16x18xf32> to vector<1x16x16xf32>
    %11 = arith.maximumf %9, %10 : vector<1x16x16xf32>
    %12 = vector.extract_strided_slice %8 {offsets = [0, 0, 2], sizes = [1, 16, 16], strides = [1, 1, 1]} : vector<1x16x18xf32> to vector<1x16x16xf32>
    %13 = arith.maximumf %11, %12 : vector<1x16x16xf32>
    %cst = arith.constant 1.000000e+00 : f32
    %14 = vector.broadcast %cst : f32 to vector<1x16x16xf32>
    %15 = arith.subf %14, %13 : vector<1x16x16xf32>
    %c0_3 = arith.constant 0 : index
    %c0_4 = arith.constant 0 : index
    %c0_5 = arith.constant 0 : index
    %16 = vector.load %arg2[%c0_3, %c0_4, %c0_5] : memref<1x16x16xf32, #tpu.memory_space<vmem>>, vector<1x16x16xf32>
    tpu.vector_store %arg2[%c0_3, %c0_4, %c0_5], %15 {strides = array<i32>} : memref<1x16x16xf32, #tpu.memory_space<vmem>>, vector<1x16x16xf32>,
    %c0_6 = arith.constant 0 : index
    %c0_7 = arith.constant 0 : index
    %17 = vector.load %arg4[%c0_6, %c0_7] : memref<1x1xf32, #tpu.memory_space<vmem>>, vector<1x1xf32>
    %18 = vector.shape_cast %15 : vector<1x16x16xf32> to vector<1x1x16x16xf32>
    %cst_8 = arith.constant dense<0.000000e+00> : vector<1xf32>
    %19 = vector.multi_reduction <add>, %18, %cst_8 [1, 2, 3] : vector<1x1x16x16xf32> to vector<1xf32>
    %20 = vector.shape_cast %19 : vector<1xf32> to vector<1x1x1x1xf32>
    %21 = vector.extract %20[0, 0, 0, 0] : f32 from vector<1x1x1x1xf32>
    %22 = vector.broadcast %21 : f32 to vector<1x1xf32>
    %23 = arith.addf %17, %22 : vector<1x1xf32>
    %c0_9 = arith.constant 0 : index
    %c0_10 = arith.constant 0 : index
    %24 = vector.load %arg4[%c0_9, %c0_10] : memref<1x1xf32, #tpu.memory_space<vmem>>, vector<1x1xf32>
    tpu.vector_store %arg4[%c0_9, %c0_10], %23 {strides = array<i32>} : memref<1x1xf32, #tpu.memory_space<vmem>>, vector<1x1xf32>,
    %c1_i32 = arith.constant 1 : i32
    %25 = arith.cmpi eq, %arg0, %c1_i32 : i32
    %26 = arith.extui %25 : i1 to i32
    %c0_i32_11 = arith.constant 0 : i32
    %27 = arith.cmpi ne, %26, %c0_i32_11 : i32
    scf.if %27 {
      %c0_12 = arith.constant 0 : index
      %c0_13 = arith.constant 0 : index
      %28 = vector.load %arg4[%c0_12, %c0_13] : memref<1x1xf32, #tpu.memory_space<vmem>>, vector<1x1xf32>
      %cst_14 = arith.constant 1.000000e+00 : f32
      %29 = vector.broadcast %cst_14 : f32 to vector<1x1xf32>
      %30 = arith.maximumf %28, %29 : vector<1x1xf32>
      %cst_15 = arith.constant 5.120000e+02 : f32
      %31 = vector.broadcast %cst_15 : f32 to vector<1x1xf32>
      %32 = arith.divf %31, %30 : vector<1x1xf32>
      %c0_16 = arith.constant 0 : index
      %c0_17 = arith.constant 0 : index
      %33 = vector.load %arg3[%c0_16, %c0_17] : memref<1x1xf32, #tpu.memory_space<vmem>>, vector<1x1xf32>
      tpu.vector_store %arg3[%c0_16, %c0_17], %32 {strides = array<i32>} : memref<1x1xf32, #tpu.memory_space<vmem>>, vector<1x1xf32>,
    } else {
    }
    return
  }
  func.func @transform_0(%arg0: i32) -> (i32, i32, i32) {
    %c0_i32 = arith.constant 0 : i32
    %c0_i32_0 = arith.constant 0 : i32
    %c0_i32_1 = arith.constant 0 : i32
    return %arg0, %c0_i32, %c0_i32_0 : i32, i32, i32
  }
  func.func @transform_1(%arg0: i32) -> (i32, i32, i32) {
    %c0_i32 = arith.constant 0 : i32
    %c0_i32_0 = arith.constant 0 : i32
    %c0_i32_1 = arith.constant 0 : i32
    return %arg0, %c0_i32, %c0_i32_0 : i32, i32, i32
  }
  func.func @transform_2(%arg0: i32) -> (i32, i32) {
    %c0_i32 = arith.constant 0 : i32
    %c0_i32_0 = arith.constant 0 : i32
    %c0_i32_1 = arith.constant 0 : i32
    return %c0_i32, %c0_i32_0 : i32, i32
  }
}

</mosaic_0001>

<llo_original>
// kernel: tpu_custom_call.1
$region0: #{tpu_custom_call.1}
  #allocation0 [shape = 'u32[]', space=smem, size = 0x4, offset = 0x4, fixed_abs, tag = 'smem constant byte address 0x4 - core index']
  #allocation1 [shape = 'u32[144,128]{1,0:T(1,128)}', space=vmem, size = 0x12000, scoped, tag = 'internal scratch']
  #allocation2 [shape = 'f32[1,1]{1,0:T(1,128)}', space=vmem, size = 0x200, scoped, tag = 'scratch operand']
  %s0 = inlined_call_operand.vmem [shape: f32[2,18,18], index: 0, kind: input, shape index: {}]
  %s1 = inlined_call_operand.hbm [shape: f32[2,16,16], index: 1, kind: output, shape index: {0}]
  %s2 = inlined_call_operand.hbm [shape: f32[1,1], index: 2, kind: output, shape index: {1}]
  %3 = xla_tuple %s1, %s2
  %s4 = sld [smem:[#allocation0]]
  $region53: #{tpu_custom_call.1} parent=0
    _
  %s6 = ssub.s32 1, %s4
  %s7 = scalar_select 0, %s6, %s4
  $region1: #{tpu_custom_call.1} parent=0
    #allocation3 [shape = 'u8[16384]{0}', space=vmem, size = 0x4000, scoped, tag = 'output window, operand 0']
    #allocation4 [shape = 's32[2]{0}', space=sflag, size = 0x8, scoped, tag = 'scoped memory for tpu_custom_call.1']
    #allocation5 [shape = 'u8[512]{0}', space=vmem, size = 0x400, scoped, tag = 'output window, operand 1, single buffered']
    #allocation6 [shape = 's32[1]{0}', space=sflag, size = 0x4, scoped, tag = 'scoped memory for tpu_custom_call.1']
    %8 = vsyncpa [#allocation4], 0
    %s9 = scalar_lea.sflag [#allocation4], 1
    %10 = vsyncpa %s9, 0
    %11 = vsyncpa [#allocation6], 0
    loop: start=0, step=1, limit=4
    $region2: #{tpu_custom_call.1} parent=1 // loop_pre_header
      _
    $region3: #{tpu_custom_call.1} parent=1 // loop_header
      %s13 = sphi 0, %s17
      %p14 = scmp.ge.s32.totalorder %s13, 4
      %s23 = sphi 0, %s25
      %s26 = sphi 0, %s23
      %s27 = sphi 0, %s26
      %s43 = sphi 0, %s27
      %s49 = sphi 0, %s51
      %s52 = sphi 0, %s49
      %s53 = sphi 0, %s52
      %s69 = sphi 0, %s53
      %s73 = sphi 0, %s73
      %s75 = sphi 0, %s73
      %s76 = sphi 0, %s75
      %s90 = sphi 0, %s76
    $region4: #{tpu_custom_call.1} parent=1 // loop_header_branch
      %16 = sbr.rel (%p14) target = $region8
    $region5: #{tpu_custom_call.1} parent=1 // loop_body
      %s18 = ssub.s32 %s13, 1
      %s19 = ssub.s32 %s13, 2
      %s20 = sadd.s32 %s13, 1
      %s21 = ssub.s32 %s13, %s20
      %p22 = scmp.eq.s32.totalorder %s21, 0
      %s24 = sadd.s32 %s23, 1
      %s25 = scalar_select %p22, %s23, %s24
      %p28 = pneg %p22
      %p29 = scmp.eq.s32.totalorder %s13, 1
      %p30 = por %p28, %p29
      %p31 = scmp.ne.s32.totalorder %s23, %s26
      %p32 = scmp.eq.s32.totalorder %s13, 0
      %p33 = por %p31, %p32
      %p34 = scmp.ne.s32.totalorder %s23, %s26
      %p35 = scmp.eq.s32.totalorder %s18, 1
      %p36 = por %p34, %p35
      %p37 = scmp.ne.s32.totalorder %s26, %s27
      %p38 = scmp.eq.s32.totalorder %s18, 0
      %p39 = por %p37, %p38
      %p40 = scmp.ne.s32.totalorder %s26, %s27
      %p41 = scmp.eq.s32.totalorder %s19, 1
      %p42 = por %p40, %p41
      %p44 = scmp.ne.s32.totalorder %s27, %s43
      %p45 = scmp.eq.s32.totalorder %s19, 0
      %p46 = por %p44, %p45
      %s47 = ssub.s32 %s13, %s20
      %p48 = scmp.eq.s32.totalorder %s47, 0
      %s50 = sadd.s32 %s49, 1
      %s51 = scalar_select %p48, %s49, %s50
      %p54 = pneg %p48
      %p55 = scmp.eq.s32.totalorder %s13, 1
      %p56 = por %p54, %p55
      %p57 = scmp.ne.s32.totalorder %s49, %s52
      %p58 = scmp.eq.s32.totalorder %s13, 0
      %p59 = por %p57, %p58
      %p60 = scmp.ne.s32.totalorder %s49, %s52
      %p61 = scmp.eq.s32.totalorder %s18, 1
      %p62 = por %p60, %p61
      %p63 = scmp.ne.s32.totalorder %s52, %s53
      %p64 = scmp.eq.s32.totalorder %s18, 0
      %p65 = por %p63, %p64
      %p66 = scmp.ne.s32.totalorder %s52, %s53
      %p67 = scmp.eq.s32.totalorder %s19, 1
      %p68 = por %p66, %p67
      %p70 = scmp.ne.s32.totalorder %s53, %s69
      %p71 = scmp.eq.s32.totalorder %s19, 0
      %p72 = por %p70, %p71
      %s74 = sadd.s32 %s73, 1
      %p77 = scmp.eq.s32.totalorder %s13, 1
      %p78 = scmp.ne.s32.totalorder %s73, %s75
      %p79 = scmp.eq.s32.totalorder %s13, 0
      %p80 = por %p78, %p79
      %p81 = scmp.ne.s32.totalorder %s73, %s75
      %p82 = scmp.eq.s32.totalorder %s18, 1
      %p83 = por %p81, %p82
      %p84 = scmp.ne.s32.totalorder %s75, %s76
      %p85 = scmp.eq.s32.totalorder %s18, 0
      %p86 = por %p84, %p85
      %p87 = scmp.ne.s32.totalorder %s75, %s76
      %p88 = scmp.eq.s32.totalorder %s19, 1
      %p89 = por %p87, %p88
      %p91 = scmp.ne.s32.totalorder %s76, %s90
      %p92 = scmp.eq.s32.totalorder %s19, 0
      %p93 = por %p91, %p92
      %p94 = scmp.le.s32.totalorder 1, %s13
      %p95 = scmp.lt.s32.totalorder %s13, 3
      %p96 = pnand %p94, %p95
      %p97 = pneg %p96
      // Predicated region
      $region9: #{tpu_custom_call.1} parent=5 // pred_check
        _
      $region10: #{tpu_custom_call.1} parent=5 // pred_check_branch
        %99 = sbr.rel (%p96) target = $region12
      $region11: #{tpu_custom_call.1} parent=5 // pred_region
        %s100 = ssub.s32 %s13, 1
      $region12: #{tpu_custom_call.1} parent=5 // pred_fallthru
        _
      %p101 = scmp.lt.s32.totalorder %s13, 2
      // Predicated region
      $region13: #{tpu_custom_call.1} parent=5 // pred_check
        %p102 = pneg %p101
      $region14: #{tpu_custom_call.1} parent=5 // pred_check_branch
        %104 = sbr.rel (%p102) target = $region16
      $region15: #{tpu_custom_call.1} parent=5 // pred_region
        // Predicated region
        $region17: #{tpu_custom_call.1} parent=15 // pred_check
          %p105 = pneg %p33
        $region18: #{tpu_custom_call.1} parent=15 // pred_check_branch
          %107 = sbr.rel (%p105) target = $region20
        $region19: #{tpu_custom_call.1} parent=15 // pred_region
          %p108 = scmp.lt.s32.totalorder %s13, 1
          %s109 = scalar_select %p108, %s13, 1
          %s110 = smul.addr %s109, 3
          %s111 = smul.addr %s110, 8
          %s112 = scalar_lea.vmem %s0, %s111
        $region20: #{tpu_custom_call.1} parent=15 // pred_fallthru
          _
      $region16: #{tpu_custom_call.1} parent=5 // pred_fallthru
        _
      %p113 = scmp.le.s32.totalorder 1, %s13
      %p114 = scmp.lt.s32.totalorder %s13, 3
      %p115 = pnand %p113, %p114
      %p116 = pneg %p115
      // Predicated region
      $region21: #{tpu_custom_call.1} parent=5 // pred_check
        _
      $region22: #{tpu_custom_call.1} parent=5 // pred_check_branch
        %118 = sbr.rel (%p115) target = $region24
      $region23: #{tpu_custom_call.1} parent=5 // pred_region
        %s119 = ssub.s32 %s13, 1
        %p120 = scmp.lt.s32.totalorder %s18, 1
        %s121 = scalar_select %p120, %s18, 1
        %s122 = smul.addr %s121, 3
        %s123 = smul.addr %s122, 8
        %s124 = scalar_lea.vmem %s0, %s123
        %p125 = pneg %p39
        %p126 = pneg %p36
        %p127 = pneg %p65
        %p128 = pneg %p62
        %s129 = sand.u32 %s52, 1
        %s130 = scalar_lea.sflag [#allocation4], %s129
        %s131 = sand.u32 %s52, 1
        %s132 = smul.addr %s131, 16
        %s133 = scalar_lea.vmem [#allocation3], %s132
        %p134 = pneg %p86
        %p135 = pneg %p83
        %p136 = scmp.lt.s32.totalorder %s18, 1
        %s137 = scalar_select %p136, %s18, 1
        %s138 = smul.addr %s137, 3
        %s139 = smul.addr %s138, 8
        %s140 = scalar_lea.vmem %s0, %s139
        %p141 = scmp.eq.s32.totalorder %s18, 0
        // Predicated region
        $region25: #{tpu_custom_call.1} parent=23 // pred_check
          %p142 = pneg %p141
        $region26: #{tpu_custom_call.1} parent=23 // pred_check_branch
          %144 = sbr.rel (%p142) target = $region28
        $region27: #{tpu_custom_call.1} parent=23 // pred_region
          %vm145 = vcmask 0
          %146 = vst.msk [vmem:[#allocation2] sm:$0x1] %vm145, 0.0
        $region28: #{tpu_custom_call.1} parent=23 // pred_fallthru
          _
        %v147 = vld [vmem:[%s140] sm:$0xff]
        %v148 = vld [vmem:[%s140 + $0x8] sm:$0xff]
        %v149 = vld [vmem:[%s140 + $0x10] sm:$0x3]
        %vm153 = vcmask 1046528
        %v154 = vrot.slane %v147, 1
        %v155 = vrot.slane %v148, 1
        %v156 = vsel %vm153, %v154, %v155
        %v157 = vrot.slane %v149, 1
        %v158 = vsel %vm153, %v155, %v157
        %v161 = vmax.f32 %v147, %v156
        %v162 = vmax.f32 %v148, %v158
        %vm163 = vcmask 1045504
        %v164 = vrot.slane %v147, 2
        %v165 = vrot.slane %v148, 2
        %v166 = vsel %vm163, %v164, %v165
        %v167 = vrot.slane %v149, 2
        %v168 = vsel %vm163, %v165, %v167
        %v171 = vmax.f32 %v161, %v166
        %v172 = vmax.f32 %v162, %v168
        %175 = vrot.lane.b32.xlu0 %v171, 127
        %v176 = vpop.permute.xlu0 %175
        %177 = vrot.lane.b32.xlu0 %v172, 127
        %v178 = vpop.permute.xlu0 %177
        %v181 = vmax.f32 %v171, %v176
        %v182 = vmax.f32 %v172, %v178
        %183 = vrot.lane.b32.xlu0 %v171, 126
        %v184 = vpop.permute.xlu0 %183
        %185 = vrot.lane.b32.xlu0 %v172, 126
        %v186 = vpop.permute.xlu0 %185
        %v189 = vmax.f32 %v181, %v184
        %v190 = vmax.f32 %v182, %v186
        %v191 = vsub.f32 1.0, %v189
        %v192 = vsub.f32 1.0, %v190
        %vm193 = vcmask 130048
        %194 = vst.msk [vmem:[%s133] sm:$0xff] %vm193, %v191
        %195 = vst.msk [vmem:[%s133 + $0x8] sm:$0xff] %vm193, %v192
        %v196 = vld [vmem:[#allocation2] sm:$0x1]
        %v197 = vsel %vm193, %v191, 0.0
        %v198 = vsel %vm193, %v192, 0.0
        %v199 = vadd.f32 %v197, %v198
        %200 = vadd.xlane.f32.xlu0 %v199
        %v201 = vpop.xlane.xlu0 %200
        %v202 = vrot.slane %v201, 4
        %v203 = vadd.f32 %v201, %v202
        %v204 = vrot.slane %v203, 2
        %v205 = vadd.f32 %v203, %v204
        %v206 = vrot.slane %v205, 1
        %v207 = vadd.f32 %v205, %v206
        %s208 = vtos %v207
        %v209 = vstv %s208
        %v210 = vadd.f32 %v196, %v209
        %vm211 = vcmask 0
        %212 = vst.msk [vmem:[#allocation2] sm:$0x1] %vm211, %v210
        %p213 = scmp.eq.s32.totalorder %s18, 1
        // Predicated region
        $region29: #{tpu_custom_call.1} parent=23 // pred_check
          %p214 = pneg %p213
        $region30: #{tpu_custom_call.1} parent=23 // pred_check_branch
          %216 = sbr.rel (%p214) target = $region32
        $region31: #{tpu_custom_call.1} parent=23 // pred_region
          %v217 = vld [vmem:[#allocation2] sm:$0x1]
          %v218 = vmax.f32 %v217, 1.0
          %v219 = vrcp.pop %v218
          %v220 = vmul.f32 512.0, %v219
          %221 = vst.msk [vmem:[#allocation5] sm:$0x1] %vm211, %v220
        $region32: #{tpu_custom_call.1} parent=23 // pred_fallthru
          _
        %s222 = sand.u32 %s52, 1
        %s223 = scalar_lea.sflag [#allocation4], %s222
        %s224 = sand.u32 %s52, 1
        %s225 = smul.addr %s224, 16
        %s226 = scalar_lea.vmem [#allocation3], %s225
        // Predicated region
        $region33: #{tpu_custom_call.1} parent=23 // pred_check
          %p227 = pneg %p62
        $region34: #{tpu_custom_call.1} parent=23 // pred_check_branch
          %229 = sbr.rel (%p227) target = $region36
        $region35: #{tpu_custom_call.1} parent=23 // pred_region
          %s231 = ssub.s32 256, 256
          %232 = vsyncadd %s223, %s231
          %s233 = smul.addr %s18, 2
          %s234 = smul.addr %s233, 128
          %s235 = scalar_lea.hbm %s1, %s234
          %s236 = sshll.u32 %s226, 4
          %s237 = int_to_ptr.vmem [resolvable:$true] %s236
          %242 = dma.vmem_to_hbm [thread:$0]  %s237, 256, %s235, %s223, 128, 128, 8
        $region36: #{tpu_custom_call.1} parent=23 // pred_fallthru
          _
        // Predicated region
        $region37: #{tpu_custom_call.1} parent=23 // pred_check
          %p243 = pneg %p83
        $region38: #{tpu_custom_call.1} parent=23 // pred_check_branch
          %245 = sbr.rel (%p243) target = $region40
        $region39: #{tpu_custom_call.1} parent=23 // pred_region
          %s247 = ssub.s32 16, 16
          %248 = vsyncadd [#allocation6], %s247
          %s250 = sshll.u32 [#allocation5], 4
          %s251 = int_to_ptr.vmem [resolvable:$true] %s250
          %253 = dma.vmem_to_hbm [thread:$0]  %s251, 16, %s2, [#allocation6]
        $region40: #{tpu_custom_call.1} parent=23 // pred_fallthru
          _
        // Predicated region
        $region41: #{tpu_custom_call.1} parent=23 // pred_check
          %p254 = pneg %p83
        $region42: #{tpu_custom_call.1} parent=23 // pred_check_branch
          %256 = sbr.rel (%p254) target = $region44
        $region43: #{tpu_custom_call.1} parent=23 // pred_region
          %257 = dma.done [#allocation6], 16
        $region44: #{tpu_custom_call.1} parent=23 // pred_fallthru
          _
      $region24: #{tpu_custom_call.1} parent=5 // pred_fallthru
        _
      %p258 = scmp.le.s32.totalorder 2, %s13
      // Predicated region
      $region45: #{tpu_custom_call.1} parent=5 // pred_check
        %p259 = pneg %p258
      $region46: #{tpu_custom_call.1} parent=5 // pred_check_branch
        %261 = sbr.rel (%p259) target = $region48
      $region47: #{tpu_custom_call.1} parent=5 // pred_region
        %s262 = ssub.s32 %s13, 2
        // Predicated region
        $region49: #{tpu_custom_call.1} parent=47 // pred_check
          %p263 = pneg %p68
        $region50: #{tpu_custom_call.1} parent=47 // pred_check_branch
          %265 = sbr.rel (%p263) target = $region52
        $region51: #{tpu_custom_call.1} parent=47 // pred_region
          %s266 = sand.u32 %s53, 1
          %s267 = scalar_lea.sflag [#allocation4], %s266
          %s268 = sand.u32 %s53, 1
          %s269 = smul.addr %s268, 16
          %s270 = scalar_lea.vmem [#allocation3], %s269
          %271 = dma.done %s267, 256
        $region52: #{tpu_custom_call.1} parent=47 // pred_fallthru
          _
      $region48: #{tpu_custom_call.1} parent=5 // pred_fallthru
        _
    $region6: #{tpu_custom_call.1} parent=1 // loop_footer
      %s17 = sadd.s32 1, %s13
    $region7: #{tpu_custom_call.1} parent=1 // loop_footer_branch
      %12 = sbr.rel target = $region3
    $region8: #{tpu_custom_call.1} parent=1 // loop_exit
      _
    %272 = vsyncpa [#allocation4], 1
    %s273 = scalar_lea.sflag [#allocation4], 1
    %274 = vsyncpa %s273, 1
    %275 = vsyncpa [#allocation6], 1

</llo_original>
